<compile_context>
chip_gen: v5e
topology: v5e:2x2
jax: 0.10.0
libtpu: 0.0.40
codegen_flags: <defaults>
</compile_context>

<pallas_src>
import jax
import jax.numpy as jnp
from jax.experimental import pallas as pl
from jax.experimental.pallas import tpu as pltpu


def _kernel(x_ref, kpad_ref, o_ref):
    # x_ref:    (B, C, Hb, W) VMEM block (Hb == size when the H crop was folded
    #           into the BlockSpec, otherwise the full H).
    # kpad_ref: (size, W) VMEM block; k left-padded with zeros so multiplying
    #           the full-width tile equals multiplying the bottom-right crop.
    # o_ref:    (B, 1) VMEM output.
    size = kpad_ref.shape[0]
    h_b = x_ref.shape[2]

    x = x_ref[...]
    if h_b != size:
        # Fallback only when H - size is not a multiple of size (crop can't be
        # expressed as a blocked index); static slice, still correct.
        x = x[:, :, h_b - size:, :]

    prod = x * kpad_ref[...]                      # (B, C, size, W), bcast over (B, C)

    # One batched reduction (trailing-axis sums only -> well-supported lowering),
    # finishing with a single (B, 1) store.
    red = jnp.sum(prod, axis=-1)                  # (B, C, size)
    red = jnp.sum(red, axis=-1)                   # (B, C)
    o_ref[...] = jnp.sum(red, axis=-1, keepdims=True)   # (B, 1)


@jax.jit
def kernel_forward(x, k):
    """x: (B, C, H, W) float32, k: (size, size) float32 -> (B,) float32."""
    B, C, H, W = x.shape
    size = k.shape[0]

    # Zero-pad k to (size, W): the leading W - size zero columns implement the
    # W crop without a lane-offset slice inside the kernel.
    k_pad = jnp.pad(k.astype(x.dtype), ((0, 0), (W - size, 0)))

    # Fold the H crop into the BlockSpec when the bottom window is block-aligned.
    h_off = H - size
    if h_off % size == 0:
        x_block = (B, C, size, W)
        h_blk = h_off // size
    else:
        x_block = (B, C, H, W)
        h_blk = 0

    cost = pl.CostEstimate(
        flops=2 * B * C * size * W,
        transcendentals=0,
        bytes_accessed=(B * C * x_block[2] * W * x.dtype.itemsize
                        + size * W * x.dtype.itemsize
                        + B * 4),
    )

    out2d = pl.pallas_call(
        _kernel,
        out_shape=jax.ShapeDtypeStruct((B, 1), jnp.float32),
        grid_spec=pltpu.PrefetchScalarGridSpec(
            num_scalar_prefetch=0,
            grid=(1,),  # single step: whole problem fits trivially in VMEM
            in_specs=[
                pl.BlockSpec(x_block, lambda i: (0, 0, h_blk, 0)),
                pl.BlockSpec((size, W), lambda i: (0, 0)),
            ],
            out_specs=pl.BlockSpec((B, 1), lambda i: (0, 0)),
        ),
        # Single TC at this size; re-grid over B as "parallel" only once B*C is
        # large enough for v7x's two cores to beat the per-step overhead.
        compiler_params=pltpu.CompilerParams(
            dimension_semantics=("arbitrary",)),
        cost_estimate=cost,
    )(x, k_pad)

    return out2d.reshape(B)


if __name__ == "__main__":
    key = jax.random.PRNGKey(0)
    kx, kk = jax.random.split(key)

    B, C, H, W = 2, 4, 16, 16
    size = 8

    x = jax.random.normal(kx, (B, C, H, W), dtype=jnp.float32)
    # Deterministic parameter init (torch.normal(0, 1, (size, size)) semantics).
    k = jax.random.normal(kk, (size, size), dtype=jnp.float32)

    out = kernel_forward(x, k)
    out = jax.block_until_ready(out)

    # Pure-JAX reference.
    ref = jnp.sum(x[:, :, -size:, -size:] * k[None, None], axis=(-3, -2, -1))
    assert out.shape == (B,)
    assert jnp.allclose(out, ref, atol=1e-4, rtol=1e-4), (out, ref)

    print("KERNEL_OK")
</pallas_src>

<mosaic_0001>
module attributes {stable_mosaic.version = 11 : i64} {
  func.func @_kernel(%arg0: i32, %arg1: memref<2x4x8x16xf32, #tpu.memory_space<vmem>>, %arg2: memref<8x16xf32, #tpu.memory_space<vmem>>, %arg3: memref<2x1xf32, #tpu.memory_space<vmem>>) attributes {dimension_semantics = [#tpu.dimension_semantics<arbitrary>], iteration_bounds = array<i64: 1>, scalar_prefetch = 0 : i64, scratch_operands = 0 : i64, tpu.core_type = #tpu.core_type<tc>, window_params = [{transform_indices = @transform_0, window_bounds = array<i64: 2, 4, 8, 16>}, {pipeline_mode = #tpu.pipeline_mode<synchronous>, transform_indices = @transform_1, window_bounds = array<i64: 8, 16>}, {pipeline_mode = #tpu.pipeline_mode<synchronous>, transform_indices = @transform_2, window_bounds = array<i64: 2, 1>}]} {
    %c0 = arith.constant 0 : index
    %c0_0 = arith.constant 0 : index
    %c0_1 = arith.constant 0 : index
    %c0_2 = arith.constant 0 : index
    %0 = vector.load %arg1[%c0, %c0_0, %c0_1, %c0_2] : memref<2x4x8x16xf32, #tpu.memory_space<vmem>>, vector<2x4x8x16xf32>
    %c0_3 = arith.constant 0 : index
    %c0_4 = arith.constant 0 : index
    %1 = vector.load %arg2[%c0_3, %c0_4] : memref<8x16xf32, #tpu.memory_space<vmem>>, vector<8x16xf32>
    %2 = vector.shape_cast %1 : vector<8x16xf32> to vector<1x1x8x16xf32>
    %3 = vector.broadcast %2 : vector<1x1x8x16xf32> to vector<2x4x8x16xf32>
    %4 = arith.mulf %0, %3 : vector<2x4x8x16xf32>
    %cst = arith.constant dense<0.000000e+00> : vector<2x4x8xf32>
    %5 = vector.multi_reduction <add>, %4, %cst [3] : vector<2x4x8x16xf32> to vector<2x4x8xf32>
    %cst_5 = arith.constant dense<0.000000e+00> : vector<2x4xf32>
    %6 = vector.multi_reduction <add>, %5, %cst_5 [2] : vector<2x4x8xf32> to vector<2x4xf32>
    %cst_6 = arith.constant dense<0.000000e+00> : vector<2xf32>
    %7 = vector.multi_reduction <add>, %6, %cst_6 [1] : vector<2x4xf32> to vector<2xf32>
    %8 = vector.shape_cast %7 : vector<2xf32> to vector<2x1xf32>
    %c0_7 = arith.constant 0 : index
    %c0_8 = arith.constant 0 : index
    %9 = vector.load %arg3[%c0_7, %c0_8] : memref<2x1xf32, #tpu.memory_space<vmem>>, vector<2x1xf32>
    tpu.vector_store %arg3[%c0_7, %c0_8], %8 {strides = array<i32>} : memref<2x1xf32, #tpu.memory_space<vmem>>, vector<2x1xf32>,
    return
  }
  func.func @transform_0(%arg0: i32) -> (i32, i32, i32, i32) {
    %c0_i32 = arith.constant 0 : i32
    %c0_i32_0 = arith.constant 0 : i32
    %c1_i32 = arith.constant 1 : i32
    %c0_i32_1 = arith.constant 0 : i32
    %c0_i32_2 = arith.constant 0 : i32
    return %c0_i32, %c0_i32_0, %c1_i32, %c0_i32_1 : i32, i32, i32, i32
  }
  func.func @transform_1(%arg0: i32) -> (i32, i32) {
    %c0_i32 = arith.constant 0 : i32
    %c0_i32_0 = arith.constant 0 : i32
    %c0_i32_1 = arith.constant 0 : i32
    return %c0_i32, %c0_i32_0 : i32, i32
  }
  func.func @transform_2(%arg0: i32) -> (i32, i32) {
    %c0_i32 = arith.constant 0 : i32
    %c0_i32_0 = arith.constant 0 : i32
    %c0_i32_1 = arith.constant 0 : i32
    return %c0_i32, %c0_i32_0 : i32, i32
  }
}

</mosaic_0001>

<llo_original>
// kernel: kernel_forward.1
$region0: #{kernel_forward.1}
  #allocation0 [shape = 'u32[]', space=smem, size = 0x4, offset = 0x4, fixed_abs, tag = 'smem constant byte address 0x4 - core index']
  #allocation1 [shape = 'u32[72,128]{1,0:T(1,128)}', space=vmem, size = 0x9000, scoped, tag = 'internal scratch']
  %s0 = inlined_call_operand.hbm [shape: f32[2,4,16,16], index: 0, kind: input, shape index: {}]
  %s1 = inlined_call_operand.vmem [shape: f32[8,16], index: 1, kind: input, shape index: {}]
  %s2 = inlined_call_operand.vmem [shape: f32[2,1], index: 2, kind: output, shape index: {}]
  %s3 = sld [smem:[#allocation0]]
  $region22: #{kernel_forward.1} parent=0
    _
  %s5 = ssub.s32 1, %s3
  %s6 = scalar_select 0, %s5, %s3
  $region1: #{kernel_forward.1} parent=0
    #allocation2 [shape = 'u8[32768]{0}', space=vmem, size = 0x8000, scoped, tag = 'input window, operand 0, single buffered']
    #allocation3 [shape = 's32[1]{0}', space=sflag, size = 0x4, scoped, tag = 'scoped memory for kernel_forward.1']
    %7 = vsyncpa [#allocation3], 0
    // Predicated region
    $region2: #{kernel_forward.1} parent=1 // pred_check
      _
    $region3: #{kernel_forward.1} parent=1 // pred_check_branch
      %9 = sbr.rel (0) target = $region5
    $region4: #{kernel_forward.1} parent=1 // pred_region
      %11 = vsyncadd [#allocation3], 0
      %s12 = scalar_lea.hbm %s0, 8
      %s13 = sshll.u32 %s12, 4
      %s14 = int_to_ptr.hbm [resolvable:$true] %s13
      %s15 = sshll.u32 [#allocation2], 4
      %s16 = int_to_ptr.vmem [resolvable:$true] %s15
      %21 = dma.hbm_to_vmem [thread:$0]  %s14, 1024, %s16, [#allocation3], 256, 128, 8
    $region5: #{kernel_forward.1} parent=1 // pred_fallthru
      _
    // Predicated region
    $region6: #{kernel_forward.1} parent=1 // pred_check
      _
    $region7: #{kernel_forward.1} parent=1 // pred_check_branch
      %23 = sbr.rel (0) target = $region9
    $region8: #{kernel_forward.1} parent=1 // pred_region
      _
    $region9: #{kernel_forward.1} parent=1 // pred_fallthru
      _
    // Predicated region
    $region10: #{kernel_forward.1} parent=1 // pred_check
      _
    $region11: #{kernel_forward.1} parent=1 // pred_check_branch
      %25 = sbr.rel (0) target = $region13
    $region12: #{kernel_forward.1} parent=1 // pred_region
      %27 = dma.done [#allocation3], 1024
    $region13: #{kernel_forward.1} parent=1 // pred_fallthru
      _
    %v28 = vld [vmem:[#allocation2] sm:$0xff]
    %v29 = vld [vmem:[#allocation2 + $0x8] sm:$0xff]
    %v30 = vld [vmem:[#allocation2 + $0x10] sm:$0xff]
    %v31 = vld [vmem:[#allocation2 + $0x18] sm:$0xff]
    %v32 = vld [vmem:[#allocation2 + $0x20] sm:$0xff]
    %v33 = vld [vmem:[#allocation2 + $0x28] sm:$0xff]
    %v34 = vld [vmem:[#allocation2 + $0x30] sm:$0xff]
    %v35 = vld [vmem:[#allocation2 + $0x38] sm:$0xff]
    %v36 = vld [vmem:[%s1] sm:$0xff]
    %v37 = vmul.f32 %v28, %v36
    %v38 = vmul.f32 %v29, %v36
    %v39 = vmul.f32 %v30, %v36
    %v40 = vmul.f32 %v31, %v36
    %v41 = vmul.f32 %v32, %v36
    %v42 = vmul.f32 %v33, %v36
    %v43 = vmul.f32 %v34, %v36
    %v44 = vmul.f32 %v35, %v36
    %vm45 = vcmask 130048
    %v46 = vsel %vm45, %v37, 0.0
    %47 = vadd.xlane.f32.xlu0 %v46
    %v48 = vpop.xlane.xlu0 %47
    %v49 = vsel %vm45, %v38, 0.0
    %50 = vadd.xlane.f32.xlu0 %v49
    %v51 = vpop.xlane.xlu0 %50
    %v52 = vsel %vm45, %v39, 0.0
    %53 = vadd.xlane.f32.xlu0 %v52
    %v54 = vpop.xlane.xlu0 %53
    %v55 = vsel %vm45, %v40, 0.0
    %56 = vadd.xlane.f32.xlu0 %v55
    %v57 = vpop.xlane.xlu0 %56
    %v58 = vsel %vm45, %v41, 0.0
    %59 = vadd.xlane.f32.xlu0 %v58
    %v60 = vpop.xlane.xlu0 %59
    %v61 = vsel %vm45, %v42, 0.0
    %62 = vadd.xlane.f32.xlu0 %v61
    %v63 = vpop.xlane.xlu0 %62
    %v64 = vsel %vm45, %v43, 0.0
    %65 = vadd.xlane.f32.xlu0 %v64
    %v66 = vpop.xlane.xlu0 %65
    %v67 = vsel %vm45, %v44, 0.0
    %68 = vadd.xlane.f32.xlu0 %v67
    %v69 = vpop.xlane.xlu0 %68
    %v78 = vlaneseq
    %v79 = vand.u32 %v78, 127
    %v80 = vperm.slane %v48, %v79
    %v81 = vperm.slane %v51, %v79
    %v82 = vperm.slane %v54, %v79
    %v83 = vperm.slane %v57, %v79
    %v84 = vperm.slane %v60, %v79
    %v85 = vperm.slane %v63, %v79
    %v86 = vperm.slane %v66, %v79
    %v87 = vperm.slane %v69, %v79
    %vm88 = vcmask 1041409
    %v89 = vsel %vm88, %v81, %v80
    %vm90 = vcmask 1042434
    %v91 = vsel %vm90, %v82, %v89
    %vm92 = vcmask 1043459
    %v93 = vsel %vm92, %v83, %v91
    %v94 = vsel %vm88, %v85, %v84
    %v95 = vsel %vm90, %v86, %v94
    %v96 = vsel %vm92, %v87, %v95
    %vm99 = vcmask 60416
    %v100 = vsel %vm99, %v93, 0.0
    %101 = vadd.xlane.f32.xlu0 %v100
    %v102 = vpop.xlane.xlu0 %101
    %v103 = vsel %vm99, %v96, 0.0
    %104 = vadd.xlane.f32.xlu0 %v103
    %v105 = vpop.xlane.xlu0 %104
    %v108 = vperm.slane %v102, %v79
    %v109 = vperm.slane %v105, %v79
    %v110 = vsel %vm88, %v109, %v108
    %vm112 = vcmask 25600
    %v113 = vsel %vm112, %v110, 0.0
    %114 = vadd.xlane.f32.xlu0 %v113
    %v115 = vpop.xlane.xlu0 %114
    %vm116 = vcmask 1024
    %117 = vst.msk [vmem:[%s2] sm:$0x3] %vm116, %v115
    // Predicated region
    $region14: #{kernel_forward.1} parent=1 // pred_check
      _
    $region15: #{kernel_forward.1} parent=1 // pred_check_branch
      %119 = sbr.rel (0) target = $region17
    $region16: #{kernel_forward.1} parent=1 // pred_region
      _
    $region17: #{kernel_forward.1} parent=1 // pred_fallthru
      _
    // Predicated region
    $region18: #{kernel_forward.1} parent=1 // pred_check
      _
    $region19: #{kernel_forward.1} parent=1 // pred_check_branch
      %121 = sbr.rel (0) target = $region21
    $region20: #{kernel_forward.1} parent=1 // pred_region
      _
    $region21: #{kernel_forward.1} parent=1 // pred_fallthru
      _
    %122 = vsyncpa [#allocation3], 1

</llo_original>
